<compile_context>
chip_gen: v7x
topology: tpu7x:2x2x1
jax: 0.10.0
libtpu: 0.0.40
codegen_flags: <defaults>
</compile_context>

<pallas_src>
import numpy as np
import jax
import jax.numpy as jnp
from jax.experimental import pallas as pl
from jax.experimental.pallas import tpu as pltpu


def _round_up(x, m):
    return (x + m - 1) // m * m


def band_transconv_kernel(bias_ref, x_ref, w_ref, o_ref):
    """One (tn, tt) output tile:  o = xs_tile @ W_tile + bias.

    bias_ref : (1,)      f32 in SMEM
    x_ref    : (tn, L)   f32 channel-pre-reduced input rows
    w_ref    : (L, tt)   f32 banded scatter-matrix tile
    o_ref    : (tn, tt)  f32
    """
    out = jnp.dot(x_ref[...], w_ref[...],
                  preferred_element_type=jnp.float32,
                  precision=jax.lax.Precision.HIGHEST)
    o_ref[...] = (out + bias_ref[0]).astype(o_ref.dtype)


def _beta_band_kernel_1d(a, b, kernel_size):
    # Beta(softplus(a)+1, softplus(b)+1).log_prob(base).exp(), sum-normalized.
    # The -log B(alpha, beta) constant cancels under the normalization.
    base = jnp.linspace(1e-5, 1.0 - 1e-5, kernel_size, dtype=jnp.float32)
    am1 = jax.nn.softplus(a.astype(jnp.float32).reshape(()))   # alpha - 1
    bm1 = jax.nn.softplus(b.astype(jnp.float32).reshape(()))   # beta - 1
    k1d = jnp.exp(am1 * jnp.log(base) + bm1 * jnp.log1p(-base))
    return k1d / jnp.sum(k1d)                                    # (K,) f32


def _choose_tiles(N, L, L_out, block_n, block_lout):
    try:
        vmem_cap = int(pltpu.get_tpu_info().vmem_capacity_bytes)
    except Exception:
        vmem_cap = 64 * 2**20                 # conservative (v7x-sized) fallback
    # Leave ~half of VMEM as headroom for compiler temporaries.
    budget = min(vmem_cap, 128 * 2**20) // 2

    tn = int(min(block_n, _round_up(N, 8)))
    tt = int(min(block_lout, _round_up(L_out, 128)))

    def est(tn_, tt_):
        # double-buffered x, W and out blocks (all f32 in the kernel)
        return 2 * (tn_ * L * 4) + 2 * (L * tt_ * 4) + 2 * (tn_ * tt_ * 4)

    while est(tn, tt) > budget and tt > 128:
        tt = max(128, (tt // 2) // 128 * 128)
    while est(tn, tt) > budget and tn > 8:
        tn = max(8, (tn // 2) // 8 * 8)

    vmem_limit = int(min(max(vmem_cap - (8 << 20), 32 * 2**20),
                         max(32 * 2**20, 2 * est(tn, tt))))
    return tn, tt, vmem_limit


def band_trans_conv_layer(x, a, b, bias, *, kernel_size, stride,
                          output_padding=4, block_n=512, block_lout=1024):
    N, C, L = x.shape
    padding = kernel_size // 2
    L_out = (L - 1) * stride - 2 * padding + kernel_size + output_padding

    # --- Parameter glue (K scalars): Beta-shaped, sum-normalized 1D kernel.
    k1d = _beta_band_kernel_1d(a, b, kernel_size)                # (K,)
    bias = bias.astype(jnp.float32).reshape(1)

    # --- Tiling: sublane-full N tiles, lane-dense L_out tiles.
    tn, tt, vmem_limit = _choose_tiles(N, L, L_out, block_n, block_lout)
    n_pad = _round_up(N, tn)
    lout_pad = _round_up(L_out, tt)
    grid = (lout_pad // tt, n_pad // tn)       # (L_out tiles, N tiles)

    # Channel pre-reduction in the wrapper: kernel input is (N_pad, L) f32, so
    # per-step DMA / VPU work drops by Cx and no channels-leading transpose.
    xs = jnp.sum(x.astype(jnp.float32), axis=1)                  # (N, L)
    if n_pad != N:
        xs = jnp.pad(xs, ((0, n_pad - N), (0, 0)))

    # Banded scatter matrix W[l, t] = k1d[t + padding - l*stride] if in [0, K).
    # TODO(synk): for very long L / L_out, band-window the contraction per
    # L_out tile (~tt/stride + K input rows) instead of contracting full L.
    l_idx = jnp.arange(L, dtype=jnp.int32)[:, None]
    t_idx = jnp.arange(lout_pad, dtype=jnp.int32)[None, :]
    k_idx = t_idx + padding - l_idx * stride
    valid = (k_idx >= 0) & (k_idx < kernel_size)
    w = jnp.where(valid, k1d[jnp.clip(k_idx, 0, kernel_size - 1)], 0.0)
    w = w.astype(jnp.float32)                                    # (L, lout_pad)

    cost = pl.CostEstimate(
        flops=2 * n_pad * lout_pad * L,
        transcendentals=0,
        bytes_accessed=4 * (n_pad * L * (lout_pad // tt)
                            + L * lout_pad + n_pad * lout_pad))

    out = pl.pallas_call(
        band_transconv_kernel,
        out_shape=jax.ShapeDtypeStruct((n_pad, lout_pad), jnp.float32),
        grid=grid,
        in_specs=[
            pl.BlockSpec(memory_space=pltpu.MemorySpace.SMEM),   # bias (1,)
            pl.BlockSpec((tn, L), lambda t, n: (n, 0)),          # xs (N_pad, L)
            pl.BlockSpec((L, tt), lambda t, n: (0, t)),          # W  (L, Lout_pad)
        ],
        out_specs=pl.BlockSpec((tn, tt), lambda t, n: (n, t)),
        compiler_params=pltpu.CompilerParams(
            dimension_semantics=("parallel", "arbitrary"),
            vmem_limit_bytes=vmem_limit),
        cost_estimate=cost,
    )(bias, xs, w)

    return out[:N, :L_out].reshape(N, 1, L_out)


def _np_reference(x, a, b, bias, kernel_size, stride, output_padding=4):
    """Pure numpy reference of F.conv_transpose1d with the Beta band kernel."""
    x = np.asarray(x, np.float64)
    N, C, L = x.shape
    K = kernel_size
    padding = K // 2
    L_out = (L - 1) * stride - 2 * padding + K + output_padding

    base = np.linspace(1e-5, 1.0 - 1e-5, K)
    am1 = np.log1p(np.exp(float(a[0])))      # softplus(a) = alpha - 1
    bm1 = np.log1p(np.exp(float(b[0])))      # softplus(b) = beta - 1
    k1d = np.exp(am1 * np.log(base) + bm1 * np.log(1.0 - base))
    k1d = k1d / k1d.sum()

    out = np.zeros((N, 1, L_out), np.float64)
    for n in range(N):
        for c in range(C):
            for l in range(L):
                for kk in range(K):
                    t = l * stride - padding + kk
                    if 0 <= t < L_out:
                        out[n, 0, t] += x[n, c, l] * k1d[kk]
    out += float(bias[0])
    return out.astype(np.float32)


if __name__ == "__main__":
    kernel_size = 7
    num_filter = 4
    stride = 5        # PyTorch requires output_padding(=4) < stride, so stride >= 5
    N, L = 2, 16

    key = jax.random.PRNGKey(0)
    kx, ka, kb = jax.random.split(key, 3)
    x = jax.random.normal(kx, (N, num_filter, L), dtype=jnp.float32)
    a = jax.random.uniform(ka, (1,), dtype=jnp.float32)   # matches torch.rand(1)
    b = jax.random.uniform(kb, (1,), dtype=jnp.float32)   # matches torch.rand(1)
    bias = jnp.zeros((1,), dtype=jnp.float32)             # matches torch.zeros(1)

    out = band_trans_conv_layer(x, a, b, bias,
                                kernel_size=kernel_size, stride=stride)
    out = jax.block_until_ready(out)

    ref = _np_reference(np.asarray(x), np.asarray(a), np.asarray(b),
                        np.asarray(bias), kernel_size, stride)
    assert out.shape == ref.shape, (out.shape, ref.shape)
    assert np.allclose(np.asarray(out), ref, atol=1e-3, rtol=1e-3)
    print("KERNEL_OK")
</pallas_src>

<mosaic_0001>
module attributes {stable_mosaic.version = 11 : i64} {
  func.func @band_transconv_kernel(%arg0: i32, %arg1: i32, %arg2: memref<1xf32, #tpu.memory_space<smem>>, %arg3: memref<8x16xf32, #tpu.memory_space<vmem>>, %arg4: memref<16x128xf32, #tpu.memory_space<vmem>>, %arg5: memref<8x128xf32, #tpu.memory_space<vmem>>) attributes {dimension_semantics = [#tpu.dimension_semantics<parallel>, #tpu.dimension_semantics<arbitrary>], iteration_bounds = array<i64: 1, 1>, scalar_prefetch = 0 : i64, scratch_operands = 0 : i64, tpu.core_type = #tpu.core_type<tc>, window_params = [{transform_indices = @transform_0, window_bounds = array<i64: 1>}, {transform_indices = @transform_1, window_bounds = array<i64: 8, 16>}, {transform_indices = @transform_2, window_bounds = array<i64: 16, 128>}, {transform_indices = @transform_3, window_bounds = array<i64: 8, 128>}]} {
    %c0 = arith.constant 0 : index
    %c0_0 = arith.constant 0 : index
    %0 = vector.load %arg3[%c0, %c0_0] : memref<8x16xf32, #tpu.memory_space<vmem>>, vector<8x16xf32>
    %c0_1 = arith.constant 0 : index
    %c0_2 = arith.constant 0 : index
    %1 = vector.load %arg4[%c0_1, %c0_2] : memref<16x128xf32, #tpu.memory_space<vmem>>, vector<16x128xf32>
    %cst = arith.constant dense<0.000000e+00> : vector<8x128xf32>
    %2 = tpu.matmul %0, %1, %cst {dimension_numbers = #tpu.dot_dimension_numbers<[1], [0], [0], [1], [0, 0, 1, 1], [], []>, precision = #tpu.contract_precision<fp32>} : vector<8x16xf32>, vector<16x128xf32>, vector<8x128xf32> -> vector<8x128xf32>
    %c0_3 = arith.constant 0 : index
    %3 = memref.load %arg2[%c0_3] : memref<1xf32, #tpu.memory_space<smem>>
    %4 = vector.broadcast %3 : f32 to vector<8x128xf32>
    %5 = arith.addf %2, %4 : vector<8x128xf32>
    %c0_4 = arith.constant 0 : index
    %c0_5 = arith.constant 0 : index
    %6 = vector.load %arg5[%c0_4, %c0_5] : memref<8x128xf32, #tpu.memory_space<vmem>>, vector<8x128xf32>
    tpu.vector_store %arg5[%c0_4, %c0_5], %5 {strides = array<i32>} : memref<8x128xf32, #tpu.memory_space<vmem>>, vector<8x128xf32>,
    return
  }
  func.func @transform_0(%arg0: i32, %arg1: i32) -> i32 {
    %c0_i32 = arith.constant 0 : i32
    %c0_i32_0 = arith.constant 0 : i32
    return %c0_i32 : i32
  }
  func.func @transform_1(%arg0: i32, %arg1: i32) -> (i32, i32) {
    %c0_i32 = arith.constant 0 : i32
    %c0_i32_0 = arith.constant 0 : i32
    return %arg1, %c0_i32 : i32, i32
  }
  func.func @transform_2(%arg0: i32, %arg1: i32) -> (i32, i32) {
    %c0_i32 = arith.constant 0 : i32
    %c0_i32_0 = arith.constant 0 : i32
    return %c0_i32, %arg0 : i32, i32
  }
  func.func @transform_3(%arg0: i32, %arg1: i32) -> (i32, i32) {
    %c0_i32 = arith.constant 0 : i32
    return %arg1, %arg0 : i32, i32
  }
}

</mosaic_0001>

<llo_original>
// kernel: tpu_custom_call.1
$region0: #{tpu_custom_call.1}
  #allocation0 [shape = 'u32[]', space=smem, size = 0x4, offset = 0x4, fixed_abs, tag = 'smem constant byte address 0x4 - core index']
  #allocation1 [shape = 'u32[144,128]{1,0:T(1,128)}', space=vmem, size = 0x12000, scoped, tag = 'internal scratch']
  #allocation2 [shape = 'f32[1]{0:T(128)S(6)}', space=smem, size = 0x200, scoped, tag = 'scoped memory for tpu_custom_call.1']
  %s0 = inlined_call_operand.<no memory space> [shape: f32[1], index: 0, kind: input, shape index: {}]
  %s1 = inlined_call_operand.hbm [shape: f32[8,16], index: 1, kind: input, shape index: {}]
  %s2 = inlined_call_operand.hbm [shape: f32[16,128], index: 2, kind: input, shape index: {}]
  %s3 = inlined_call_operand.hbm [shape: f32[8,128], index: 3, kind: output, shape index: {}]
  %s4 = sld [smem:[#allocation0]]
  $region30: #{tpu_custom_call.1} parent=0
    _
  %s6 = ssub.s32 1, %s4
  %s7 = scalar_select 0, %s6, %s4
  %8 = sst [smem:[#allocation2]] %s0
  $region1: #{tpu_custom_call.1} parent=0
    #allocation3 [shape = 'u8[4096]{0}', space=vmem, size = 0x1000, scoped, tag = 'input window, operand 1, single buffered']
    #allocation4 [shape = 's32[1]{0}', space=sflag, size = 0x4, scoped, tag = 'scoped memory for tpu_custom_call.1']
    #allocation5 [shape = 's32[1]{0}', space=sflag, size = 0x4, scoped, tag = 'scoped memory for tpu_custom_call.1']
    #allocation6 [shape = 'u8[8192]{0}', space=vmem, size = 0x2000, scoped, tag = 'input window, operand 2, single buffered']
    #allocation7 [shape = 's32[1]{0}', space=sflag, size = 0x4, scoped, tag = 'scoped memory for tpu_custom_call.1']
    #allocation8 [shape = 'u8[4096]{0}', space=vmem, size = 0x1000, scoped, tag = 'output window, operand 0, single buffered']
    %9 = vsyncpa [#allocation4], 0
    %10 = vsyncpa [#allocation7], 0
    %11 = vsyncpa [#allocation5], 0
    // Predicated region
    $region2: #{tpu_custom_call.1} parent=1 // pred_check
      _
    $region3: #{tpu_custom_call.1} parent=1 // pred_check_branch
      %13 = sbr.rel (0) target = $region5
    $region4: #{tpu_custom_call.1} parent=1 // pred_region
      _
    $region5: #{tpu_custom_call.1} parent=1 // pred_fallthru
      _
    // Predicated region
    $region6: #{tpu_custom_call.1} parent=1 // pred_check
      _
    $region7: #{tpu_custom_call.1} parent=1 // pred_check_branch
      %15 = sbr.rel (0) target = $region9
    $region8: #{tpu_custom_call.1} parent=1 // pred_region
      %s17 = ssub.s32 128, 128
      %18 = vsyncadd [#allocation4], %s17
      %s20 = sshll.u32 [#allocation3], 4
      %s21 = int_to_ptr.vmem [resolvable:$true] %s20
      %23 = dma.hbm_to_vmem [thread:$0]  %s1, 128, %s21, [#allocation4]
    $region9: #{tpu_custom_call.1} parent=1 // pred_fallthru
      _
    // Predicated region
    $region10: #{tpu_custom_call.1} parent=1 // pred_check
      _
    $region11: #{tpu_custom_call.1} parent=1 // pred_check_branch
      %25 = sbr.rel (0) target = $region13
    $region12: #{tpu_custom_call.1} parent=1 // pred_region
      %s27 = ssub.s32 256, 256
      %28 = vsyncadd [#allocation7], %s27
      %s29 = sshll.u32 [#allocation6], 4
      %s30 = int_to_ptr.vmem [resolvable:$true] %s29
      %35 = dma.hbm_to_vmem [thread:$0]  %s2, 256, %s30, [#allocation7], 128, 128, 8
    $region13: #{tpu_custom_call.1} parent=1 // pred_fallthru
      _
    // Predicated region
    $region14: #{tpu_custom_call.1} parent=1 // pred_check
      _
    $region15: #{tpu_custom_call.1} parent=1 // pred_check_branch
      %37 = sbr.rel (0) target = $region17
    $region16: #{tpu_custom_call.1} parent=1 // pred_region
      %38 = dma.done [#allocation4], 128
    $region17: #{tpu_custom_call.1} parent=1 // pred_fallthru
      _
    // Predicated region
    $region18: #{tpu_custom_call.1} parent=1 // pred_check
      _
    $region19: #{tpu_custom_call.1} parent=1 // pred_check_branch
      %40 = sbr.rel (0) target = $region21
    $region20: #{tpu_custom_call.1} parent=1 // pred_region
      %41 = dma.done [#allocation7], 256
    $region21: #{tpu_custom_call.1} parent=1 // pred_fallthru
      _
    %v42 = vld [vmem:[#allocation3] sm:$0xff]
    %v43 = vld [vmem:[#allocation6] sm:$0xff]
    %v44 = vld [vmem:[#allocation6 + $0x8] sm:$0xff]
    %s45 = sld [smem:[#allocation2]]
    %v46 = vstv %s45
    %vm47 = vcmask 130048
    %v49 = vsel %vm47, %v42, 0
    %51 = vmatprep.subr.mxu0 0.0
    %v52 = vand.u32 %v43, 4294901760
    %53 = vmatpush1.msra.mxu0 %v52
    %54 = vmatprep.subr.mxu0 0.0
    %v55 = vand.u32 %v44, 4294901760
    %56 = vmatpush1.msra.mxu0 %v55
    %57 = vmatprep.subr.mxu0 0.0
    %58 = vmatpush1.msra.mxu0 0.0
    %59 = vmatprep.subr.mxu0 0.0
    %60 = vmatpush1.msra.mxu0 0.0
    %61 = vmatprep.subr.mxu0 0.0
    %62 = vmatpush1.msra.mxu0 0.0
    %63 = vmatprep.subr.mxu0 0.0
    %64 = vmatpush1.msra.mxu0 0.0
    %65 = vmatprep.subr.mxu0 0.0
    %66 = vmatpush1.msra.mxu0 0.0
    %67 = vmatprep.subr.mxu0 0.0
    %68 = vmatpush1.msra.mxu0 0.0
    %69 = vmatprep.subr.mxu0 0.0
    %70 = vmatpush1.msra.mxu0 0.0
    %71 = vmatprep.subr.mxu0 0.0
    %72 = vmatpush1.msra.mxu0 0.0
    %73 = vmatprep.subr.mxu0 0.0
    %74 = vmatpush1.msra.mxu0 0.0
    %75 = vmatprep.subr.mxu0 0.0
    %76 = vmatpush1.msra.mxu0 0.0
    %77 = vmatprep.subr.mxu0 0.0
    %78 = vmatpush1.msra.mxu0 0.0
    %79 = vmatprep.subr.mxu0 0.0
    %80 = vmatpush1.msra.mxu0 0.0
    %81 = vmatprep.subr.mxu0 0.0
    %82 = vmatpush1.msra.mxu0 0.0
    %83 = vmatprep.subr.mxu0 0.0
    %84 = vmatpush1.msra.mxu0 0.0
    %85 = vmatprep.subr.mxu0 0.0
    %86 = vmatpush1.msra.mxu0 0.0
    %87 = vmatprep.subr.mxu0 0.0
    %88 = vmatpush1.msra.mxu0 0.0
    %89 = vmatprep.subr.mxu0 0.0
    %90 = vmatpush1.msra.mxu0 0.0
    %91 = vmatprep.subr.mxu0 0.0
    %92 = vmatpush1.msra.mxu0 0.0
    %93 = vmatprep.subr.mxu0 0.0
    %94 = vmatpush1.msra.mxu0 0.0
    %95 = vmatprep.subr.mxu0 0.0
    %96 = vmatpush1.msra.mxu0 0.0
    %97 = vmatprep.subr.mxu0 0.0
    %98 = vmatpush1.msra.mxu0 0.0
    %99 = vmatprep.subr.mxu0 0.0
    %100 = vmatpush1.msra.mxu0 0.0
    %101 = vmatprep.subr.mxu0 0.0
    %102 = vmatpush1.msra.mxu0 0.0
    %103 = vmatprep.subr.mxu0 0.0
    %104 = vmatpush1.msra.mxu0 0.0
    %105 = vmatprep.subr.mxu0 0.0
    %106 = vmatpush1.msra.mxu0 0.0
    %107 = vmatprep.subr.mxu0 0.0
    %108 = vmatpush1.msra.mxu0 0.0
    %109 = vmatprep.subr.mxu0 0.0
    %110 = vmatpush1.msra.mxu0 0.0
    %111 = vmatprep.subr.mxu0 0.0
    %112 = vmatpush1.msra.mxu0 0.0
    %113 = vmatprep.subr.mxu0 0.0
    %114 = vmatpush1.msra.mxu0 0.0
    %115 = vmatprep.subr.mxu0 0.0
    %116 = vmatpush1.msra.mxu0 0.0
    %117 = vmatprep.mubr.f32.mxu0 0.0
    %v118 = vand.u32 %v49, 4294901760
    %v119 = vsub.f32 %v49, %v118
    %v120 = vand.u32 %v119, 4294901760
    %v121 = vsub.f32 %v119, %v120
    %v122 = vand.u32 %v121, 4294901760
    %123 = vmatmul.mubr.f32.gmra.mrb[0].mxu0 %v122
    %v124 = vpop.f32.mrb[0].mxu0
    %v125 = vadd.f32 %v46, %v124
    %v126 = vpop.f32.mrb[0].mxu0
    %127 = vdwg.mxu0
    %128 = vmatprep.subr.mxu0 0.0
    %v129 = vand.u32 %v43, 4294901760
    %v130 = vsub.f32 %v43, %v129
    %v131 = vand.u32 %v130, 4294901760
    %v132 = vsub.f32 %v130, %v131
    %v133 = vand.u32 %v132, 4294901760
    %134 = vmatpush1.msra.mxu0 %v133
    %135 = vmatprep.subr.mxu0 0.0
    %v136 = vand.u32 %v44, 4294901760
    %v137 = vsub.f32 %v44, %v136
    %v138 = vand.u32 %v137, 4294901760
    %v139 = vsub.f32 %v137, %v138
    %v140 = vand.u32 %v139, 4294901760
    %141 = vmatpush1.msra.mxu0 %v140
    %142 = vmatprep.subr.mxu0 0.0
    %143 = vmatpush1.msra.mxu0 0.0
    %144 = vmatprep.subr.mxu0 0.0
    %145 = vmatpush1.msra.mxu0 0.0
    %146 = vmatprep.subr.mxu0 0.0
    %147 = vmatpush1.msra.mxu0 0.0
    %148 = vmatprep.subr.mxu0 0.0
    %149 = vmatpush1.msra.mxu0 0.0
    %150 = vmatprep.subr.mxu0 0.0
    %151 = vmatpush1.msra.mxu0 0.0
    %152 = vmatprep.subr.mxu0 0.0
    %153 = vmatpush1.msra.mxu0 0.0
    %154 = vmatprep.subr.mxu0 0.0
    %155 = vmatpush1.msra.mxu0 0.0
    %156 = vmatprep.subr.mxu0 0.0
    %157 = vmatpush1.msra.mxu0 0.0
    %158 = vmatprep.subr.mxu0 0.0
    %159 = vmatpush1.msra.mxu0 0.0
    %160 = vmatprep.subr.mxu0 0.0
    %161 = vmatpush1.msra.mxu0 0.0
    %162 = vmatprep.subr.mxu0 0.0
    %163 = vmatpush1.msra.mxu0 0.0
    %164 = vmatprep.subr.mxu0 0.0
    %165 = vmatpush1.msra.mxu0 0.0
    %166 = vmatprep.subr.mxu0 0.0
    %167 = vmatpush1.msra.mxu0 0.0
    %168 = vmatprep.subr.mxu0 0.0
    %169 = vmatpush1.msra.mxu0 0.0
    %170 = vmatprep.subr.mxu0 0.0
    %171 = vmatpush1.msra.mxu0 0.0
    %172 = vmatprep.subr.mxu0 0.0
    %173 = vmatpush1.msra.mxu0 0.0
    %174 = vmatprep.subr.mxu0 0.0
    %175 = vmatpush1.msra.mxu0 0.0
    %176 = vmatprep.subr.mxu0 0.0
    %177 = vmatpush1.msra.mxu0 0.0
    %178 = vmatprep.subr.mxu0 0.0
    %179 = vmatpush1.msra.mxu0 0.0
    %180 = vmatprep.subr.mxu0 0.0
    %181 = vmatpush1.msra.mxu0 0.0
    %182 = vmatprep.subr.mxu0 0.0
    %183 = vmatpush1.msra.mxu0 0.0
    %184 = vmatprep.subr.mxu0 0.0
    %185 = vmatpush1.msra.mxu0 0.0
    %186 = vmatprep.subr.mxu0 0.0
    %187 = vmatpush1.msra.mxu0 0.0
    %188 = vmatprep.subr.mxu0 0.0
    %189 = vmatpush1.msra.mxu0 0.0
    %190 = vmatprep.subr.mxu0 0.0
    %191 = vmatpush1.msra.mxu0 0.0
    %192 = vmatprep.subr.mxu0 0.0
    %193 = vmatpush1.msra.mxu0 0.0
    %194 = vmatprep.subr.mxu0 0.0
    %195 = vmatpush1.msra.mxu0 0.0
    %196 = vmatprep.subr.mxu0 0.0
    %197 = vmatpush1.msra.mxu0 0.0
    %198 = vmatprep.subr.mxu0 0.0
    %199 = vmatpush1.msra.mxu0 0.0
    %200 = vmatprep.subr.mxu0 0.0
    %201 = vmatpush1.msra.mxu0 0.0
    %202 = vmatprep.mubr.f32.mxu0 0.0
    %v203 = vand.u32 %v49, 4294901760
    %204 = vmatmul.mubr.f32.gmra.mrb[0].mxu0 %v203
    %v205 = vpop.f32.mrb[0].mxu0
    %v206 = vadd.f32 %v125, %v205
    %v207 = vpop.f32.mrb[0].mxu0
    %208 = vdwg.mxu0
    %209 = vmatprep.subr.mxu0 0.0
    %v210 = vand.u32 %v43, 4294901760
    %v211 = vsub.f32 %v43, %v210
    %212 = vmatpush1.msra.mxu0 %v211
    %213 = vmatprep.subr.mxu0 0.0
    %v214 = vand.u32 %v44, 4294901760
    %v215 = vsub.f32 %v44, %v214
    %216 = vmatpush1.msra.mxu0 %v215
    %217 = vmatprep.subr.mxu0 0.0
    %218 = vmatpush1.msra.mxu0 0.0
    %219 = vmatprep.subr.mxu0 0.0
    %220 = vmatpush1.msra.mxu0 0.0
    %221 = vmatprep.subr.mxu0 0.0
    %222 = vmatpush1.msra.mxu0 0.0
    %223 = vmatprep.subr.mxu0 0.0
    %224 = vmatpush1.msra.mxu0 0.0
    %225 = vmatprep.subr.mxu0 0.0
    %226 = vmatpush1.msra.mxu0 0.0
    %227 = vmatprep.subr.mxu0 0.0
    %228 = vmatpush1.msra.mxu0 0.0
    %229 = vmatprep.subr.mxu0 0.0
    %230 = vmatpush1.msra.mxu0 0.0
    %231 = vmatprep.subr.mxu0 0.0
    %232 = vmatpush1.msra.mxu0 0.0
    %233 = vmatprep.subr.mxu0 0.0
    %234 = vmatpush1.msra.mxu0 0.0
    %235 = vmatprep.subr.mxu0 0.0
    %236 = vmatpush1.msra.mxu0 0.0
    %237 = vmatprep.subr.mxu0 0.0
    %238 = vmatpush1.msra.mxu0 0.0
    %239 = vmatprep.subr.mxu0 0.0
    %240 = vmatpush1.msra.mxu0 0.0
    %241 = vmatprep.subr.mxu0 0.0
    %242 = vmatpush1.msra.mxu0 0.0
    %243 = vmatprep.subr.mxu0 0.0
    %244 = vmatpush1.msra.mxu0 0.0
    %245 = vmatprep.subr.mxu0 0.0
    %246 = vmatpush1.msra.mxu0 0.0
    %247 = vmatprep.subr.mxu0 0.0
    %248 = vmatpush1.msra.mxu0 0.0
    %249 = vmatprep.subr.mxu0 0.0
    %250 = vmatpush1.msra.mxu0 0.0
    %251 = vmatprep.subr.mxu0 0.0
    %252 = vmatpush1.msra.mxu0 0.0
    %253 = vmatprep.subr.mxu0 0.0
    %254 = vmatpush1.msra.mxu0 0.0
    %255 = vmatprep.subr.mxu0 0.0
    %256 = vmatpush1.msra.mxu0 0.0
    %257 = vmatprep.subr.mxu0 0.0
    %258 = vmatpush1.msra.mxu0 0.0
    %259 = vmatprep.subr.mxu0 0.0
    %260 = vmatpush1.msra.mxu0 0.0
    %261 = vmatprep.subr.mxu0 0.0
    %262 = vmatpush1.msra.mxu0 0.0
    %263 = vmatprep.subr.mxu0 0.0
    %264 = vmatpush1.msra.mxu0 0.0
    %265 = vmatprep.subr.mxu0 0.0
    %266 = vmatpush1.msra.mxu0 0.0
    %267 = vmatprep.subr.mxu0 0.0
    %268 = vmatpush1.msra.mxu0 0.0
    %269 = vmatprep.subr.mxu0 0.0
    %270 = vmatpush1.msra.mxu0 0.0
    %271 = vmatprep.subr.mxu0 0.0
    %272 = vmatpush1.msra.mxu0 0.0
    %273 = vmatprep.subr.mxu0 0.0
    %274 = vmatpush1.msra.mxu0 0.0
    %275 = vmatprep.subr.mxu0 0.0
    %276 = vmatpush1.msra.mxu0 0.0
    %277 = vmatprep.mubr.f32.mxu0 0.0
    %v278 = vand.u32 %v49, 4294901760
    %v279 = vsub.f32 %v49, %v278
    %280 = vmatmul.mubr.f32.gmra.mrb[0].mxu0 %v279
    %v281 = vpop.f32.mrb[0].mxu0
    %v282 = vadd.f32 %v206, %v281
    %v283 = vpop.f32.mrb[0].mxu0
    %284 = vdwg.mxu0
    %285 = vmatprep.subr.mxu0 0.0
    %v286 = vand.u32 %v43, 4294901760
    %287 = vmatpush1.msra.mxu0 %v286
    %288 = vmatprep.subr.mxu0 0.0
    %v289 = vand.u32 %v44, 4294901760
    %290 = vmatpush1.msra.mxu0 %v289
    %291 = vmatprep.subr.mxu0 0.0
    %292 = vmatpush1.msra.mxu0 0.0
    %293 = vmatprep.subr.mxu0 0.0
    %294 = vmatpush1.msra.mxu0 0.0
    %295 = vmatprep.subr.mxu0 0.0
    %296 = vmatpush1.msra.mxu0 0.0
    %297 = vmatprep.subr.mxu0 0.0
    %298 = vmatpush1.msra.mxu0 0.0
    %299 = vmatprep.subr.mxu0 0.0
    %300 = vmatpush1.msra.mxu0 0.0
    %301 = vmatprep.subr.mxu0 0.0
    %302 = vmatpush1.msra.mxu0 0.0
    %303 = vmatprep.subr.mxu0 0.0
    %304 = vmatpush1.msra.mxu0 0.0
    %305 = vmatprep.subr.mxu0 0.0
    %306 = vmatpush1.msra.mxu0 0.0
    %307 = vmatprep.subr.mxu0 0.0
    %308 = vmatpush1.msra.mxu0 0.0
    %309 = vmatprep.subr.mxu0 0.0
    %310 = vmatpush1.msra.mxu0 0.0
    %311 = vmatprep.subr.mxu0 0.0
    %312 = vmatpush1.msra.mxu0 0.0
    %313 = vmatprep.subr.mxu0 0.0
    %314 = vmatpush1.msra.mxu0 0.0
    %315 = vmatprep.subr.mxu0 0.0
    %316 = vmatpush1.msra.mxu0 0.0
    %317 = vmatprep.subr.mxu0 0.0
    %318 = vmatpush1.msra.mxu0 0.0
    %319 = vmatprep.subr.mxu0 0.0
    %320 = vmatpush1.msra.mxu0 0.0
    %321 = vmatprep.subr.mxu0 0.0
    %322 = vmatpush1.msra.mxu0 0.0
    %323 = vmatprep.subr.mxu0 0.0
    %324 = vmatpush1.msra.mxu0 0.0
    %325 = vmatprep.subr.mxu0 0.0
    %326 = vmatpush1.msra.mxu0 0.0
    %327 = vmatprep.subr.mxu0 0.0
    %328 = vmatpush1.msra.mxu0 0.0
    %329 = vmatprep.subr.mxu0 0.0
    %330 = vmatpush1.msra.mxu0 0.0
    %331 = vmatprep.subr.mxu0 0.0
    %332 = vmatpush1.msra.mxu0 0.0
    %333 = vmatprep.subr.mxu0 0.0
    %334 = vmatpush1.msra.mxu0 0.0
    %335 = vmatprep.subr.mxu0 0.0
    %336 = vmatpush1.msra.mxu0 0.0
    %337 = vmatprep.subr.mxu0 0.0
    %338 = vmatpush1.msra.mxu0 0.0
    %339 = vmatprep.subr.mxu0 0.0
    %340 = vmatpush1.msra.mxu0 0.0
    %341 = vmatprep.subr.mxu0 0.0
    %342 = vmatpush1.msra.mxu0 0.0
    %343 = vmatprep.subr.mxu0 0.0
    %344 = vmatpush1.msra.mxu0 0.0
    %345 = vmatprep.subr.mxu0 0.0
    %346 = vmatpush1.msra.mxu0 0.0
    %347 = vmatprep.subr.mxu0 0.0
    %348 = vmatpush1.msra.mxu0 0.0
    %349 = vmatprep.subr.mxu0 0.0
    %350 = vmatpush1.msra.mxu0 0.0
    %351 = vmatprep.mubr.f32.mxu0 0.0
    %v352 = vand.u32 %v49, 4294901760
    %v353 = vsub.f32 %v49, %v352
    %v354 = vand.u32 %v353, 4294901760
    %355 = vmatmul.mubr.f32.gmra.mrb[0].mxu0 %v354
    %v356 = vpop.f32.mrb[0].mxu0
    %v357 = vadd.f32 %v282, %v356
    %v358 = vpop.f32.mrb[0].mxu0
    %359 = vdwg.mxu0
    %360 = vmatprep.subr.mxu0 0.0
    %v361 = vand.u32 %v43, 4294901760
    %v362 = vsub.f32 %v43, %v361
    %v363 = vand.u32 %v362, 4294901760
    %364 = vmatpush1.msra.mxu0 %v363
    %365 = vmatprep.subr.mxu0 0.0
    %v366 = vand.u32 %v44, 4294901760
    %v367 = vsub.f32 %v44, %v366
    %v368 = vand.u32 %v367, 4294901760
    %369 = vmatpush1.msra.mxu0 %v368
    %370 = vmatprep.subr.mxu0 0.0
    %371 = vmatpush1.msra.mxu0 0.0
    %372 = vmatprep.subr.mxu0 0.0
    %373 = vmatpush1.msra.mxu0 0.0
    %374 = vmatprep.subr.mxu0 0.0
    %375 = vmatpush1.msra.mxu0 0.0
    %376 = vmatprep.subr.mxu0 0.0
    %377 = vmatpush1.msra.mxu0 0.0
    %378 = vmatprep.subr.mxu0 0.0
    %379 = vmatpush1.msra.mxu0 0.0
    %380 = vmatprep.subr.mxu0 0.0
    %381 = vmatpush1.msra.mxu0 0.0
    %382 = vmatprep.subr.mxu0 0.0
    %383 = vmatpush1.msra.mxu0 0.0
    %384 = vmatprep.subr.mxu0 0.0
    %385 = vmatpush1.msra.mxu0 0.0
    %386 = vmatprep.subr.mxu0 0.0
    %387 = vmatpush1.msra.mxu0 0.0
    %388 = vmatprep.subr.mxu0 0.0
    %389 = vmatpush1.msra.mxu0 0.0
    %390 = vmatprep.subr.mxu0 0.0
    %391 = vmatpush1.msra.mxu0 0.0
    %392 = vmatprep.subr.mxu0 0.0
    %393 = vmatpush1.msra.mxu0 0.0
    %394 = vmatprep.subr.mxu0 0.0
    %395 = vmatpush1.msra.mxu0 0.0
    %396 = vmatprep.subr.mxu0 0.0
    %397 = vmatpush1.msra.mxu0 0.0
    %398 = vmatprep.subr.mxu0 0.0
    %399 = vmatpush1.msra.mxu0 0.0
    %400 = vmatprep.subr.mxu0 0.0
    %401 = vmatpush1.msra.mxu0 0.0
    %402 = vmatprep.subr.mxu0 0.0
    %403 = vmatpush1.msra.mxu0 0.0
    %404 = vmatprep.subr.mxu0 0.0
    %405 = vmatpush1.msra.mxu0 0.0
    %406 = vmatprep.subr.mxu0 0.0
    %407 = vmatpush1.msra.mxu0 0.0
    %408 = vmatprep.subr.mxu0 0.0
    %409 = vmatpush1.msra.mxu0 0.0
    %410 = vmatprep.subr.mxu0 0.0
    %411 = vmatpush1.msra.mxu0 0.0
    %412 = vmatprep.subr.mxu0 0.0
    %413 = vmatpush1.msra.mxu0 0.0
    %414 = vmatprep.subr.mxu0 0.0
    %415 = vmatpush1.msra.mxu0 0.0
    %416 = vmatprep.subr.mxu0 0.0
    %417 = vmatpush1.msra.mxu0 0.0
    %418 = vmatprep.subr.mxu0 0.0
    %419 = vmatpush1.msra.mxu0 0.0
    %420 = vmatprep.subr.mxu0 0.0
    %421 = vmatpush1.msra.mxu0 0.0
    %422 = vmatprep.subr.mxu0 0.0
    %423 = vmatpush1.msra.mxu0 0.0
    %424 = vmatprep.subr.mxu0 0.0
    %425 = vmatpush1.msra.mxu0 0.0
    %426 = vmatprep.subr.mxu0 0.0
    %427 = vmatpush1.msra.mxu0 0.0
    %428 = vmatprep.subr.mxu0 0.0
    %429 = vmatpush1.msra.mxu0 0.0
    %430 = vmatprep.mubr.f32.mxu0 0.0
    %v431 = vand.u32 %v49, 4294901760
    %432 = vmatmul.mubr.f32.gmra.mrb[0].mxu0 %v431
    %v433 = vpop.f32.mrb[0].mxu0
    %v434 = vadd.f32 %v357, %v433
    %v435 = vpop.f32.mrb[0].mxu0
    %436 = vdwg.mxu0
    %437 = vmatprep.subr.mxu0 0.0
    %v438 = vand.u32 %v43, 4294901760
    %439 = vmatpush1.msra.mxu0 %v438
    %440 = vmatprep.subr.mxu0 0.0
    %v441 = vand.u32 %v44, 4294901760
    %442 = vmatpush1.msra.mxu0 %v441
    %443 = vmatprep.subr.mxu0 0.0
    %444 = vmatpush1.msra.mxu0 0.0
    %445 = vmatprep.subr.mxu0 0.0
    %446 = vmatpush1.msra.mxu0 0.0
    %447 = vmatprep.subr.mxu0 0.0
    %448 = vmatpush1.msra.mxu0 0.0
    %449 = vmatprep.subr.mxu0 0.0
    %450 = vmatpush1.msra.mxu0 0.0
    %451 = vmatprep.subr.mxu0 0.0
    %452 = vmatpush1.msra.mxu0 0.0
    %453 = vmatprep.subr.mxu0 0.0
    %454 = vmatpush1.msra.mxu0 0.0
    %455 = vmatprep.subr.mxu0 0.0
    %456 = vmatpush1.msra.mxu0 0.0
    %457 = vmatprep.subr.mxu0 0.0
    %458 = vmatpush1.msra.mxu0 0.0
    %459 = vmatprep.subr.mxu0 0.0
    %460 = vmatpush1.msra.mxu0 0.0
    %461 = vmatprep.subr.mxu0 0.0
    %462 = vmatpush1.msra.mxu0 0.0
    %463 = vmatprep.subr.mxu0 0.0
    %464 = vmatpush1.msra.mxu0 0.0
    %465 = vmatprep.subr.mxu0 0.0
    %466 = vmatpush1.msra.mxu0 0.0
    %467 = vmatprep.subr.mxu0 0.0
    %468 = vmatpush1.msra.mxu0 0.0
    %469 = vmatprep.subr.mxu0 0.0
    %470 = vmatpush1.msra.mxu0 0.0
    %471 = vmatprep.subr.mxu0 0.0
    %472 = vmatpush1.msra.mxu0 0.0
    %473 = vmatprep.subr.mxu0 0.0
    %474 = vmatpush1.msra.mxu0 0.0
    %475 = vmatprep.subr.mxu0 0.0
    %476 = vmatpush1.msra.mxu0 0.0
    %477 = vmatprep.subr.mxu0 0.0
    %478 = vmatpush1.msra.mxu0 0.0
    %479 = vmatprep.subr.mxu0 0.0
    %480 = vmatpush1.msra.mxu0 0.0
    %481 = vmatprep.subr.mxu0 0.0
    %482 = vmatpush1.msra.mxu0 0.0
    %483 = vmatprep.subr.mxu0 0.0
    %484 = vmatpush1.msra.mxu0 0.0
    %485 = vmatprep.subr.mxu0 0.0
    %486 = vmatpush1.msra.mxu0 0.0
    %487 = vmatprep.subr.mxu0 0.0
    %488 = vmatpush1.msra.mxu0 0.0
    %489 = vmatprep.subr.mxu0 0.0
    %490 = vmatpush1.msra.mxu0 0.0
    %491 = vmatprep.subr.mxu0 0.0
    %492 = vmatpush1.msra.mxu0 0.0
    %493 = vmatprep.subr.mxu0 0.0
    %494 = vmatpush1.msra.mxu0 0.0
    %495 = vmatprep.subr.mxu0 0.0
    %496 = vmatpush1.msra.mxu0 0.0
    %497 = vmatprep.subr.mxu0 0.0
    %498 = vmatpush1.msra.mxu0 0.0
    %499 = vmatprep.subr.mxu0 0.0
    %500 = vmatpush1.msra.mxu0 0.0
    %501 = vmatprep.subr.mxu0 0.0
    %502 = vmatpush1.msra.mxu0 0.0
    %503 = vmatprep.mubr.f32.mxu0 0.0
    %v504 = vand.u32 %v49, 4294901760
    %505 = vmatmul.mubr.f32.gmra.mrb[0].mxu0 %v504
    %v506 = vpop.f32.mrb[0].mxu0
    %v507 = vadd.f32 %v434, %v506
    %v508 = vpop.f32.mrb[0].mxu0
    %509 = vdwg.mxu0
    %510 = vst [vmem:[#allocation8] sm:$0xff] %v507
    // Predicated region
    $region22: #{tpu_custom_call.1} parent=1 // pred_check
      _
    $region23: #{tpu_custom_call.1} parent=1 // pred_check_branch
      %512 = sbr.rel (0) target = $region25
    $region24: #{tpu_custom_call.1} parent=1 // pred_region
      %s514 = ssub.s32 128, 128
      %515 = vsyncadd [#allocation5], %s514
      %s517 = sshll.u32 [#allocation8], 4
      %s518 = int_to_ptr.vmem [resolvable:$true] %s517
      %520 = dma.vmem_to_hbm [thread:$0]  %s518, 128, %s3, [#allocation5]
    $region25: #{tpu_custom_call.1} parent=1 // pred_fallthru
      _
    // Predicated region
    $region26: #{tpu_custom_call.1} parent=1 // pred_check
      _
    $region27: #{tpu_custom_call.1} parent=1 // pred_check_branch
      %522 = sbr.rel (0) target = $region29
    $region28: #{tpu_custom_call.1} parent=1 // pred_region
      %523 = dma.done [#allocation5], 128
    $region29: #{tpu_custom_call.1} parent=1 // pred_fallthru
      _
    %524 = vsyncpa [#allocation4], 1
    %525 = vsyncpa [#allocation7], 1
    %526 = vsyncpa [#allocation5], 1

</llo_original>
